<compile_context>
chip_gen: v6e
topology: v6e:2x2x1
jax: 0.10.0
libtpu: 0.0.40
codegen_flags: <defaults>
</compile_context>

<pallas_src>
import jax
import jax.numpy as jnp
from jax import lax
from jax.experimental import pallas as pl
from jax.experimental.pallas import tpu as pltpu

NEG_SLOPE = 0.1
BN_EPS = 1e-5
VMEM_LIMIT_BYTES = 48 * 1024 * 1024   # <= v7x physical 64 MiB, ample on v5e/v6e
K_SINGLE_STEP_MAX = 1024              # whole-K-resident fast path threshold


def _round_up(x, m):
    return (x + m - 1) // m * m


def _pick_tile(dim, candidates):
    for c in candidates:
        if dim % c == 0:
            return c
    return dim


def _choose_tm(M):
    """Pick the M tile BEFORE padding M so it never collapses to a tiny tile."""
    if M <= 256:
        return _round_up(M, 16)             # single M block
    if M <= 1024:
        return _round_up(-(-M // 2), 16)    # two M blocks (feeds both v7x TCs)
    return 512                              # big M: 512-row tiles (~85% roofline)


# ----------------------------------------------------------------------------
# Pallas kernels: bf16 GEMM, f32 accumulation, fused bias + LeakyReLU epilogue.
# (BN scale is pre-folded into the weight columns.)
# ----------------------------------------------------------------------------
def _gemm_bias_act_kernel(a_ref, b_ref, c_ref, o_ref):
    """Single K step: whole reduction resident, no accumulator scratch."""
    y = jnp.dot(a_ref[...], b_ref[...], preferred_element_type=jnp.float32)
    y = y + c_ref[...]
    o_ref[...] = jnp.where(y > 0, y, NEG_SLOPE * y).astype(o_ref.dtype)


def _gemm_bias_act_kernel_acc(a_ref, b_ref, c_ref, o_ref, acc_ref):
    """K-tiled path with f32 accumulator scratch (supports bf16 output)."""
    @pl.when(pl.program_id(2) == 0)
    def _():
        acc_ref[...] = jnp.zeros_like(acc_ref)

    acc_ref[...] += jnp.dot(a_ref[...], b_ref[...],
                            preferred_element_type=jnp.float32)

    @pl.when(pl.program_id(2) == pl.num_programs(2) - 1)
    def _():
        y = acc_ref[...] + c_ref[...]
        o_ref[...] = jnp.where(y > 0, y, NEG_SLOPE * y).astype(o_ref.dtype)


# ----------------------------------------------------------------------------
# Fused GEMM + bias + LeakyReLU pallas_call builder
# ----------------------------------------------------------------------------
def _fused_conv_gemm(a_bf16, w2d_bf16, bias_f32, tm, M, N, out_dtype):
    """leaky_relu(a @ w2d + bias), un-padded to (M, N).

    a: (Mp, Kp) bf16, w2d: (Kp, Np) bf16 (BN scale folded in), bias: (1, Np) f32.
    """
    Mp, Kp = a_bf16.shape
    Kp_b, Np = w2d_bf16.shape
    assert Kp == Kp_b and Mp % tm == 0 and Np % 128 == 0

    # Keep the full padded-Cout extent resident when it fits so the (large) A
    # operand is streamed from HBM exactly once.
    tn = Np if Np <= 1024 else _pick_tile(Np, (1024, 512, 256, 128))

    # Double-buffered VMEM footprint at the worst case (tm=512, tn=1024,
    # Kp<=1024, f32 out): 2*A(2MiB) + 2*B(4MiB) + 2*out(4MiB) + acc(2MiB)
    # ~ 12 MiB << VMEM_LIMIT_BYTES, safe even on v7x's 64 MiB.

    if Kp <= K_SINGLE_STEP_MAX:
        grid = (Mp // tm, Np // tn)
        out = pl.pallas_call(
            _gemm_bias_act_kernel,
            out_shape=jax.ShapeDtypeStruct((Mp, Np), out_dtype),
            grid_spec=pltpu.PrefetchScalarGridSpec(
                num_scalar_prefetch=0,
                grid=grid,
                in_specs=[
                    pl.BlockSpec((tm, Kp), lambda i, j: (i, 0)),
                    pl.BlockSpec((Kp, tn), lambda i, j: (0, j)),
                    pl.BlockSpec((1, tn), lambda i, j: (0, j)),
                ],
                out_specs=pl.BlockSpec((tm, tn), lambda i, j: (i, j)),
            ),
            compiler_params=pltpu.CompilerParams(
                dimension_semantics=("parallel", "parallel"),
                vmem_limit_bytes=VMEM_LIMIT_BYTES,
            ),
        )(a_bf16, w2d_bf16, bias_f32)
    else:
        tk = 512
        grid = (Mp // tm, Np // tn, Kp // tk)
        out = pl.pallas_call(
            _gemm_bias_act_kernel_acc,
            out_shape=jax.ShapeDtypeStruct((Mp, Np), out_dtype),
            grid_spec=pltpu.PrefetchScalarGridSpec(
                num_scalar_prefetch=0,
                grid=grid,
                in_specs=[
                    pl.BlockSpec((tm, tk), lambda i, j, k: (i, k)),
                    pl.BlockSpec((tk, tn), lambda i, j, k: (k, j)),
                    pl.BlockSpec((1, tn), lambda i, j, k: (0, j)),
                ],
                out_specs=pl.BlockSpec((tm, tn), lambda i, j, k: (i, j)),
                scratch_shapes=[pltpu.VMEM((tm, tn), jnp.float32)],
            ),
            compiler_params=pltpu.CompilerParams(
                dimension_semantics=("parallel", "parallel", "arbitrary"),
                vmem_limit_bytes=VMEM_LIMIT_BYTES,
            ),
        )(a_bf16, w2d_bf16, bias_f32)

    return out[:M, :N]


# ----------------------------------------------------------------------------
# im2col (bf16 from the start, single fused pad), K ordering (kh, kw, Cin)
# ----------------------------------------------------------------------------
def _im2col_bf16(x_nhwc, k, stride, pad, Mp, Kp):
    x = x_nhwc.astype(jnp.bfloat16)            # cast BEFORE tap extraction
    if pad > 0:                                # `pad` is a static Python int
        x = jnp.pad(x, ((0, 0), (pad, pad), (pad, pad), (0, 0)))
    n, h, w, c = x.shape
    ho = (h - k) // stride + 1
    wo = (w - k) // stride + 1
    taps = []
    for i in range(k):
        for j in range(k):
            taps.append(x[:, i:i + (ho - 1) * stride + 1:stride,
                          j:j + (wo - 1) * stride + 1:stride, :])
    p = jnp.concatenate(taps, axis=-1) if len(taps) > 1 else taps[0]
    M, K = n * ho * wo, k * k * c
    p = p.reshape(M, K)
    if (Mp, Kp) != (M, K):
        p = jnp.pad(p, ((0, Mp - M), (0, Kp - K)))   # single fused bf16 pad
    return p, (n, ho, wo)


# ----------------------------------------------------------------------------
# Parameters (weights pre-reshaped / pre-padded / pre-cast, BN scale folded)
# ----------------------------------------------------------------------------
def make_downsample(key, in_channels, out_channels):
    k, stride, pad = 3, 2, 1
    fan_in = in_channels * k * k
    wkey, bkey = jax.random.split(key)
    w = jax.random.normal(wkey, (k, k, in_channels, out_channels),
                          jnp.float32) / jnp.sqrt(fan_in)
    b = jax.random.normal(bkey, (out_channels,), jnp.float32) * 0.01

    # BN inference-form fold (running stats / affine at PyTorch defaults).
    gamma = jnp.ones((out_channels,), jnp.float32)
    beta = jnp.zeros((out_channels,), jnp.float32)
    mean = jnp.zeros((out_channels,), jnp.float32)
    var = jnp.ones((out_channels,), jnp.float32)
    scale = gamma * lax.rsqrt(var + BN_EPS)
    bias = beta + (b - mean) * scale

    K = k * k * in_channels
    # Small K: keep the exact extent (no zero-padded A bytes from HBM).
    Kp = K if K <= K_SINGLE_STEP_MAX else _round_up(K, 512)
    Np = _round_up(out_channels, 128)

    # Fold BN scale into the weight columns in f32, then cast once to bf16.
    w2d = (w * scale[None, None, None, :]).reshape(K, out_channels)
    w2d_p = jnp.zeros((Kp, Np), jnp.bfloat16).at[:K, :out_channels].set(
        w2d.astype(jnp.bfloat16))
    bias_p = jnp.zeros((1, Np), jnp.float32).at[0, :out_channels].set(bias)

    cfg = dict(k=k, stride=stride, pad=pad, cin=in_channels,
               cout=out_channels, K=K, Kp=Kp, Np=Np)       # plain Python ints
    params = dict(w2d=w2d_p, bias=bias_p)                   # device arrays
    ref_params = dict(w=w, scale=scale, bias=bias)          # f32 reference
    return cfg, params, ref_params


# ----------------------------------------------------------------------------
# Forward (NCHW in / NCHW out).  cfg is closed over -> static at trace time.
# ----------------------------------------------------------------------------
def build_downsample_forward(cfg, out_dtype=jnp.float32):
    k, stride, pad = cfg["k"], cfg["stride"], cfg["pad"]
    cout, Kp = cfg["cout"], cfg["Kp"]

    @jax.jit
    def forward(x_nchw, params):
        x = jnp.transpose(x_nchw, (0, 2, 3, 1))            # NCHW -> NHWC
        n, h, w, _ = x.shape
        ho = (h + 2 * pad - k) // stride + 1
        wo = (w + 2 * pad - k) // stride + 1
        M = n * ho * wo
        tm = _choose_tm(M)
        Mp = tm * pl.cdiv(M, tm)

        patches, _ = _im2col_bf16(x, k, stride, pad, Mp, Kp)
        y = _fused_conv_gemm(patches, params["w2d"], params["bias"],
                             tm, M, cout, out_dtype)
        y = y.reshape(n, ho, wo, cout)
        return jnp.transpose(y, (0, 3, 1, 2))               # NHWC -> NCHW

    return forward


def downsample_reference(x_nchw, ref_params, cfg):
    """Pure-JAX f32 reference for correctness checking."""
    x = jnp.transpose(x_nchw, (0, 2, 3, 1)).astype(jnp.float32)
    y = lax.conv_general_dilated(
        x, ref_params["w"],
        window_strides=(cfg["stride"], cfg["stride"]),
        padding=[(cfg["pad"], cfg["pad"]), (cfg["pad"], cfg["pad"])],
        dimension_numbers=("NHWC", "HWIO", "NHWC"))
    y = y * ref_params["scale"] + ref_params["bias"]
    y = jnp.where(y > 0, y, NEG_SLOPE * y)
    return jnp.transpose(y, (0, 3, 1, 2))


# ----------------------------------------------------------------------------
if __name__ == "__main__":
    key = jax.random.PRNGKey(0)
    pkey, xkey = jax.random.split(key)

    in_channels, out_channels = 4, 8
    cfg, params, ref_params = make_downsample(pkey, in_channels, out_channels)
    forward = build_downsample_forward(cfg)     # f32 out (module semantics)

    x = jax.random.normal(xkey, (2, in_channels, 16, 16), jnp.float32)

    out = forward(x, params)
    jax.block_until_ready(out)

    assert out.shape == (2, out_channels, 8, 8), out.shape
    assert bool(jnp.all(jnp.isfinite(out)))

    ref = downsample_reference(x, ref_params, cfg)
    max_err = float(jnp.max(jnp.abs(out - ref)))
    tol = 2e-2 * max(1.0, float(jnp.max(jnp.abs(ref))))   # scaled by magnitude
    assert max_err <= tol, f"max abs error {max_err} > tol {tol}"

    print("KERNEL_OK")
</pallas_src>

<mosaic_0001>
module attributes {stable_mosaic.version = 11 : i64} {
  func.func @_gemm_bias_act_kernel(%arg0: i32, %arg1: i32, %arg2: memref<128x36xbf16, #tpu.memory_space<vmem>>, %arg3: memref<36x128xbf16, #tpu.memory_space<vmem>>, %arg4: memref<1x128xf32, #tpu.memory_space<vmem>>, %arg5: memref<128x128xf32, #tpu.memory_space<vmem>>) attributes {dimension_semantics = [#tpu.dimension_semantics<parallel>, #tpu.dimension_semantics<parallel>], iteration_bounds = array<i64: 1, 1>, scalar_prefetch = 0 : i64, scratch_operands = 0 : i64, tpu.core_type = #tpu.core_type<tc>, window_params = [{transform_indices = @transform_0, window_bounds = array<i64: 128, 36>}, {transform_indices = @transform_1, window_bounds = array<i64: 36, 128>}, {transform_indices = @transform_2, window_bounds = array<i64: 1, 128>}, {transform_indices = @transform_3, window_bounds = array<i64: 128, 128>}]} {
    %c0 = arith.constant 0 : index
    %c0_0 = arith.constant 0 : index
    %0 = vector.load %arg2[%c0, %c0_0] : memref<128x36xbf16, #tpu.memory_space<vmem>>, vector<128x36xbf16>
    %c0_1 = arith.constant 0 : index
    %c0_2 = arith.constant 0 : index
    %1 = vector.load %arg3[%c0_1, %c0_2] : memref<36x128xbf16, #tpu.memory_space<vmem>>, vector<36x128xbf16>
    %cst = arith.constant dense<0.000000e+00> : vector<128x128xf32>
    %2 = tpu.matmul %0, %1, %cst {dimension_numbers = #tpu.dot_dimension_numbers<[1], [0], [0], [1], [0, 0, 1, 1], [], []>} : vector<128x36xbf16>, vector<36x128xbf16>, vector<128x128xf32> -> vector<128x128xf32>
    %c0_3 = arith.constant 0 : index
    %c0_4 = arith.constant 0 : index
    %3 = vector.load %arg4[%c0_3, %c0_4] : memref<1x128xf32, #tpu.memory_space<vmem>>, vector<1x128xf32>
    %4 = vector.broadcast %3 : vector<1x128xf32> to vector<128x128xf32>
    %5 = arith.addf %2, %4 : vector<128x128xf32>
    %cst_5 = arith.constant 0.000000e+00 : f32
    %6 = vector.broadcast %cst_5 : f32 to vector<128x128xf32>
    %7 = arith.cmpf ogt, %5, %6 : vector<128x128xf32>
    %cst_6 = arith.constant 1.000000e-01 : f32
    %8 = vector.broadcast %cst_6 : f32 to vector<128x128xf32>
    %9 = arith.mulf %8, %5 : vector<128x128xf32>
    %10 = arith.select %7, %5, %9 : vector<128x128xi1>, vector<128x128xf32>
    %c0_7 = arith.constant 0 : index
    %c0_8 = arith.constant 0 : index
    %11 = vector.load %arg5[%c0_7, %c0_8] : memref<128x128xf32, #tpu.memory_space<vmem>>, vector<128x128xf32>
    tpu.vector_store %arg5[%c0_7, %c0_8], %10 {strides = array<i32>} : memref<128x128xf32, #tpu.memory_space<vmem>>, vector<128x128xf32>,
    return
  }
  func.func @transform_0(%arg0: i32, %arg1: i32) -> (i32, i32) {
    %c0_i32 = arith.constant 0 : i32
    %c0_i32_0 = arith.constant 0 : i32
    return %arg0, %c0_i32 : i32, i32
  }
  func.func @transform_1(%arg0: i32, %arg1: i32) -> (i32, i32) {
    %c0_i32 = arith.constant 0 : i32
    %c0_i32_0 = arith.constant 0 : i32
    return %c0_i32, %arg1 : i32, i32
  }
  func.func @transform_2(%arg0: i32, %arg1: i32) -> (i32, i32) {
    %c0_i32 = arith.constant 0 : i32
    %c0_i32_0 = arith.constant 0 : i32
    return %c0_i32, %arg1 : i32, i32
  }
  func.func @transform_3(%arg0: i32, %arg1: i32) -> (i32, i32) {
    %c0_i32 = arith.constant 0 : i32
    return %arg0, %arg1 : i32, i32
  }
}

</mosaic_0001>

<llo_original>
// kernel: forward.1
$region0: #{forward.1}
  #allocation0 [shape = 'u32[]', space=smem, size = 0x4, offset = 0x4, fixed_abs, tag = 'smem constant byte address 0x4 - core index']
  #allocation1 [shape = 'u32[144,128]{1,0:T(1,128)}', space=vmem, size = 0x12000, scoped, tag = 'internal scratch']
  %s0 = inlined_call_operand.vmem [shape: bf16[128,36], index: 0, kind: input, shape index: {}]
  %s1 = inlined_call_operand.vmem [shape: bf16[36,128], index: 1, kind: input, shape index: {}]
  %s2 = inlined_call_operand.vmem [shape: f32[1,128], index: 2, kind: input, shape index: {}]
  %s3 = inlined_call_operand.vmem [shape: f32[128,128], index: 3, kind: output, shape index: {}]
  %s4 = sld [smem:[#allocation0]]
  $region22: #{forward.1} parent=0
    _
  %s6 = ssub.s32 1, %s4
  %s7 = scalar_select 0, %s6, %s4
  // Predicated region
  $region2: #{forward.1} parent=0 // pred_check
    _
  $region3: #{forward.1} parent=0 // pred_check_branch
    %9 = sbr.rel (0) target = $region5
  $region4: #{forward.1} parent=0 // pred_region
    _
  $region5: #{forward.1} parent=0 // pred_fallthru
    _
  // Predicated region
  $region6: #{forward.1} parent=0 // pred_check
    _
  $region7: #{forward.1} parent=0 // pred_check_branch
    %11 = sbr.rel (0) target = $region9
  $region8: #{forward.1} parent=0 // pred_region
    _
  $region9: #{forward.1} parent=0 // pred_fallthru
    _
  // Predicated region
  $region10: #{forward.1} parent=0 // pred_check
    _
  $region11: #{forward.1} parent=0 // pred_check_branch
    %13 = sbr.rel (0) target = $region13
  $region12: #{forward.1} parent=0 // pred_region
    _
  $region13: #{forward.1} parent=0 // pred_fallthru
    _
  %v15 = vld [vmem:[%s0] sm:$0xf]
  %v16 = vld [vmem:[%s0 + $0x4] sm:$0xf]
  %v17 = vld [vmem:[%s0 + $0x8] sm:$0xf]
  %v18 = vld [vmem:[%s0 + $0xc] sm:$0xf]
  %v19 = vld [vmem:[%s0 + $0x10] sm:$0xf]
  %v20 = vld [vmem:[%s0 + $0x14] sm:$0xf]
  %v21 = vld [vmem:[%s0 + $0x18] sm:$0xf]
  %v22 = vld [vmem:[%s0 + $0x1c] sm:$0xf]
  %v23 = vld [vmem:[%s0 + $0x20] sm:$0xf]
  %v24 = vld [vmem:[%s0 + $0x24] sm:$0xf]
  %v25 = vld [vmem:[%s0 + $0x28] sm:$0xf]
  %v26 = vld [vmem:[%s0 + $0x2c] sm:$0xf]
  %v27 = vld [vmem:[%s0 + $0x30] sm:$0xf]
  %v28 = vld [vmem:[%s0 + $0x34] sm:$0xf]
  %v29 = vld [vmem:[%s0 + $0x38] sm:$0xf]
  %v30 = vld [vmem:[%s0 + $0x3c] sm:$0xf]
  %v31 = vld [vmem:[%s1] sm:$0xf]
  %v32 = vld [vmem:[%s1 + $0x4] sm:$0xf]
  %v33 = vld [vmem:[%s1 + $0x8] sm:$0xf]
  %v34 = vld [vmem:[%s1 + $0xc] sm:$0xf]
  %v35 = vld [vmem:[%s1 + $0x10] sm:$0x3]
  %v36 = vld [vmem:[%s2] sm:$0x1]
  %v38 = vlaneseq
  %v39 = vshrl.u32 %v38, 7
  %v40 = vsub.s32 0, %v39
  %v41 = vrot.slane %v36, %v40
  %v59 = vunpack.c.l.b16 %v15
  %v60 = vunpack.c.l.b16 %v16
  %v61 = vunpack.c.l.b16 %v17
  %v62 = vunpack.c.l.b16 %v18
  %v63 = vunpack.c.l.b16 %v19
  %v64 = vunpack.c.l.b16 %v20
  %v65 = vunpack.c.l.b16 %v21
  %v66 = vunpack.c.l.b16 %v22
  %v67 = vunpack.c.l.b16 %v23
  %v68 = vunpack.c.l.b16 %v24
  %v69 = vunpack.c.l.b16 %v25
  %v70 = vunpack.c.l.b16 %v26
  %v71 = vunpack.c.l.b16 %v27
  %v72 = vunpack.c.l.b16 %v28
  %v73 = vunpack.c.l.b16 %v29
  %v74 = vunpack.c.l.b16 %v30
  %v75 = vpack.c.b16 %v60, %v59
  %v76 = vpack.c.b16 %v62, %v61
  %v77 = vpack.c.b16 %v64, %v63
  %v78 = vpack.c.b16 %v66, %v65
  %v79 = vpack.c.b16 %v68, %v67
  %v80 = vpack.c.b16 %v70, %v69
  %v81 = vpack.c.b16 %v72, %v71
  %v82 = vpack.c.b16 %v74, %v73
  %v88 = vunpack.c.l.b16 %v31
  %v89 = vunpack.c.l.b16 %v32
  %v90 = vunpack.c.l.b16 %v33
  %v91 = vunpack.c.l.b16 %v34
  %v92 = vunpack.c.l.b16 %v35
  %v93 = vpack.c.b16 %v89, %v88
  %v94 = vpack.c.b16 %v91, %v90
  %v95 = vpack.c.b16 %v92, %v92
  %vm98 = vcmask 293888
  %v100 = vsel %vm98, %v75, 0
  %v103 = vsel %vm98, %v76, 0
  %v106 = vsel %vm98, %v77, 0
  %v109 = vsel %vm98, %v78, 0
  %v112 = vsel %vm98, %v79, 0
  %v115 = vsel %vm98, %v80, 0
  %v118 = vsel %vm98, %v81, 0
  %v121 = vsel %vm98, %v82, 0
  %vm123 = vcmask 1041408
  %v125 = vsel %vm123, %v95, 0
  %127 = vmatprep.subr.bf16.mxu0 0
  %128 = vmatpush1.bf16.msra.mxu0 0
  %129 = vmatprep.subr.bf16.mxu0 0
  %130 = vmatpush1.bf16.msra.mxu0 0
  %131 = vmatprep.subr.bf16.mxu0 0
  %132 = vmatpush1.bf16.msra.mxu0 0
  %133 = vmatprep.subr.bf16.mxu0 0
  %134 = vmatpush1.bf16.msra.mxu0 0
  %135 = vmatprep.subr.bf16.mxu0 0
  %136 = vmatpush1.bf16.msra.mxu0 0
  %137 = vmatprep.subr.bf16.mxu0 0
  %138 = vmatpush1.bf16.msra.mxu0 %v125
  %139 = vmatprep.subr.bf16.mxu0 0
  %140 = vmatpush1.bf16.msra.mxu0 %v94
  %141 = vmatprep.subr.bf16.mxu0 0
  %142 = vmatpush1.bf16.msra.mxu0 %v93
  %143 = vmatprep.subr.bf16.mxu0 0
  %144 = vmatpush2.bf16.msra.mxu0 0
  %145 = vmatprep.subr.bf16.mxu0 0
  %146 = vmatpush2.bf16.msra.mxu0 0
  %147 = vmatprep.subr.bf16.mxu0 0
  %148 = vmatpush2.bf16.msra.mxu0 0
  %149 = vmatprep.subr.bf16.mxu0 0
  %150 = vmatpush2.bf16.msra.mxu0 0
  %151 = vmatprep.subr.bf16.mxu0 0
  %152 = vmatpush2.bf16.msra.mxu0 0
  %153 = vmatprep.subr.bf16.mxu0 0
  %154 = vmatpush2.bf16.msra.mxu0 0
  %155 = vmatprep.subr.bf16.mxu0 0
  %156 = vmatpush2.bf16.msra.mxu0 0
  %157 = vmatprep.subr.bf16.mxu0 0
  %158 = vmatpush2.bf16.msra.mxu0 0
  %159 = vmatprep.mubr.bf16.mxu0 0
  %160 = vmatmul.mubr.bf16.gmra.mxu0 %v100
  %v161 = vpop.f32.mrf.mxu0
  %v162 = vadd.f32 %v41, %v161
  %v163 = vpop.f32.mrf.mxu0
  %v164 = vpop.f32.mrf.mxu0
  %v165 = vadd.f32 %v41, %v164
  %v166 = vpop.f32.mrf.mxu0
  %167 = vmatprep.mubr.bf16.mxu0 0
  %168 = vmatmul.mubr.bf16.gmra.mxu0 %v103
  %v169 = vpop.f32.mrf.mxu0
  %v170 = vadd.f32 %v41, %v169
  %v171 = vpop.f32.mrf.mxu0
  %v172 = vpop.f32.mrf.mxu0
  %v173 = vadd.f32 %v41, %v172
  %v174 = vpop.f32.mrf.mxu0
  %175 = vmatprep.mubr.bf16.mxu0 0
  %176 = vmatmul.mubr.bf16.gmra.mxu0 %v106
  %v177 = vpop.f32.mrf.mxu0
  %v178 = vadd.f32 %v41, %v177
  %v179 = vpop.f32.mrf.mxu0
  %v180 = vpop.f32.mrf.mxu0
  %v181 = vadd.f32 %v41, %v180
  %v182 = vpop.f32.mrf.mxu0
  %183 = vmatprep.mubr.bf16.mxu0 0
  %184 = vmatmul.mubr.bf16.gmra.mxu0 %v109
  %v185 = vpop.f32.mrf.mxu0
  %v186 = vadd.f32 %v41, %v185
  %v187 = vpop.f32.mrf.mxu0
  %v188 = vpop.f32.mrf.mxu0
  %v189 = vadd.f32 %v41, %v188
  %v190 = vpop.f32.mrf.mxu0
  %191 = vmatprep.mubr.bf16.mxu0 0
  %192 = vmatmul.mubr.bf16.gmra.mxu0 %v112
  %v193 = vpop.f32.mrf.mxu0
  %v194 = vadd.f32 %v41, %v193
  %v195 = vpop.f32.mrf.mxu0
  %v196 = vpop.f32.mrf.mxu0
  %v197 = vadd.f32 %v41, %v196
  %v198 = vpop.f32.mrf.mxu0
  %199 = vmatprep.mubr.bf16.mxu0 0
  %200 = vmatmul.mubr.bf16.gmra.mxu0 %v115
  %v201 = vpop.f32.mrf.mxu0
  %v202 = vadd.f32 %v41, %v201
  %v203 = vpop.f32.mrf.mxu0
  %v204 = vpop.f32.mrf.mxu0
  %v205 = vadd.f32 %v41, %v204
  %v206 = vpop.f32.mrf.mxu0
  %207 = vmatprep.mubr.bf16.mxu0 0
  %208 = vmatmul.mubr.bf16.gmra.mxu0 %v118
  %v209 = vpop.f32.mrf.mxu0
  %v210 = vadd.f32 %v41, %v209
  %v211 = vpop.f32.mrf.mxu0
  %v212 = vpop.f32.mrf.mxu0
  %v213 = vadd.f32 %v41, %v212
  %v214 = vpop.f32.mrf.mxu0
  %215 = vmatprep.mubr.bf16.mxu0 0
  %216 = vmatmul.mubr.bf16.gmra.mxu0 %v121
  %v217 = vpop.f32.mrf.mxu0
  %v218 = vadd.f32 %v41, %v217
  %v219 = vpop.f32.mrf.mxu0
  %v220 = vpop.f32.mrf.mxu0
  %v221 = vadd.f32 %v41, %v220
  %v222 = vpop.f32.mrf.mxu0
  %223 = vdwg.mxu0
  %vm224 = vcmp.gt.f32.partialorder %v162, 0.0
  %vm225 = vcmp.gt.f32.partialorder %v165, 0.0
  %vm226 = vcmp.gt.f32.partialorder %v170, 0.0
  %vm227 = vcmp.gt.f32.partialorder %v173, 0.0
  %vm228 = vcmp.gt.f32.partialorder %v178, 0.0
  %vm229 = vcmp.gt.f32.partialorder %v181, 0.0
  %vm230 = vcmp.gt.f32.partialorder %v186, 0.0
  %vm231 = vcmp.gt.f32.partialorder %v189, 0.0
  %vm232 = vcmp.gt.f32.partialorder %v194, 0.0
  %vm233 = vcmp.gt.f32.partialorder %v197, 0.0
  %vm234 = vcmp.gt.f32.partialorder %v202, 0.0
  %vm235 = vcmp.gt.f32.partialorder %v205, 0.0
  %vm236 = vcmp.gt.f32.partialorder %v210, 0.0
  %vm237 = vcmp.gt.f32.partialorder %v213, 0.0
  %vm238 = vcmp.gt.f32.partialorder %v218, 0.0
  %vm239 = vcmp.gt.f32.partialorder %v221, 0.0
  %v240 = vmul.f32 %v162, 0.1
  %v241 = vmul.f32 %v165, 0.1
  %v242 = vmul.f32 %v170, 0.1
  %v243 = vmul.f32 %v173, 0.1
  %v244 = vmul.f32 %v178, 0.1
  %v245 = vmul.f32 %v181, 0.1
  %v246 = vmul.f32 %v186, 0.1
  %v247 = vmul.f32 %v189, 0.1
  %v248 = vmul.f32 %v194, 0.1
  %v249 = vmul.f32 %v197, 0.1
  %v250 = vmul.f32 %v202, 0.1
  %v251 = vmul.f32 %v205, 0.1
  %v252 = vmul.f32 %v210, 0.1
  %v253 = vmul.f32 %v213, 0.1
  %v254 = vmul.f32 %v218, 0.1
  %v255 = vmul.f32 %v221, 0.1
  %v256 = vsel %vm224, %v162, %v240
  %v257 = vsel %vm225, %v165, %v241
  %v258 = vsel %vm226, %v170, %v242
  %v259 = vsel %vm227, %v173, %v243
  %v260 = vsel %vm228, %v178, %v244
  %v261 = vsel %vm229, %v181, %v245
  %v262 = vsel %vm230, %v186, %v246
  %v263 = vsel %vm231, %v189, %v247
  %v264 = vsel %vm232, %v194, %v248
  %v265 = vsel %vm233, %v197, %v249
  %v266 = vsel %vm234, %v202, %v250
  %v267 = vsel %vm235, %v205, %v251
  %v268 = vsel %vm236, %v210, %v252
  %v269 = vsel %vm237, %v213, %v253
  %v270 = vsel %vm238, %v218, %v254
  %v271 = vsel %vm239, %v221, %v255
  %272 = vst [vmem:[%s3] sm:$0xff] %v256
  %273 = vst [vmem:[%s3 + $0x8] sm:$0xff] %v257
  %274 = vst [vmem:[%s3 + $0x10] sm:$0xff] %v258
  %275 = vst [vmem:[%s3 + $0x18] sm:$0xff] %v259
  %276 = vst [vmem:[%s3 + $0x20] sm:$0xff] %v260
  %277 = vst [vmem:[%s3 + $0x28] sm:$0xff] %v261
  %278 = vst [vmem:[%s3 + $0x30] sm:$0xff] %v262
  %279 = vst [vmem:[%s3 + $0x38] sm:$0xff] %v263
  %280 = vst [vmem:[%s3 + $0x40] sm:$0xff] %v264
  %281 = vst [vmem:[%s3 + $0x48] sm:$0xff] %v265
  %282 = vst [vmem:[%s3 + $0x50] sm:$0xff] %v266
  %283 = vst [vmem:[%s3 + $0x58] sm:$0xff] %v267
  %284 = vst [vmem:[%s3 + $0x60] sm:$0xff] %v268
  %285 = vst [vmem:[%s3 + $0x68] sm:$0xff] %v269
  %286 = vst [vmem:[%s3 + $0x70] sm:$0xff] %v270
  %287 = vst [vmem:[%s3 + $0x78] sm:$0xff] %v271
  // Predicated region
  $region14: #{forward.1} parent=0 // pred_check
    _
  $region15: #{forward.1} parent=0 // pred_check_branch
    %289 = sbr.rel (0) target = $region17
  $region16: #{forward.1} parent=0 // pred_region
    _
  $region17: #{forward.1} parent=0 // pred_fallthru
    _
  // Predicated region
  $region18: #{forward.1} parent=0 // pred_check
    _
  $region19: #{forward.1} parent=0 // pred_check_branch
    %291 = sbr.rel (0) target = $region21
  $region20: #{forward.1} parent=0 // pred_region
    _
  $region21: #{forward.1} parent=0 // pred_fallthru
    _

</llo_original>
